<compile_context>
chip_gen: v6e
topology: v6e:2x2x1
jax: 0.10.0
libtpu: 0.0.40
codegen_flags: <defaults>
</compile_context>

<pallas_src>
import functools

import jax
import jax.numpy as jnp
from jax import lax
from jax.experimental import pallas as pl
from jax.experimental.pallas import tpu as pltpu


def _elu(v):
    # Clamp the negative branch so the unselected side of where() never sees exp(huge).
    return jnp.where(v > 0, v, jnp.exp(jnp.minimum(v, 0.0)) - 1.0)


def _shift_rows(x, s):
    """y[l] = x[l + s], rows outside [0, L) are zero. s is a static Python int."""
    if s == 0:
        return x
    zeros = jnp.zeros((abs(s),) + x.shape[1:], x.dtype)
    if s > 0:
        return jnp.concatenate([x[s:], zeros], axis=0)
    return jnp.concatenate([zeros, x[:s]], axis=0)


def _conv1d_taps(xb, w_ref, kernel_size, pad):
    """Conv1d over rows of xb (L, Cin) as K shifted bf16 matmuls, f32 accumulation.

    w_ref: (K, Cin, Cout) bf16 ref;  out[l, co] = sum_{k,ci} x[l + k - pad, ci] w[k, ci, co]
    """
    L = xb.shape[0]
    cout = w_ref.shape[2]
    acc = jnp.zeros((L, cout), jnp.float32)
    for k in range(kernel_size):                       # static unroll, K is small
        s = k - pad
        acc = acc + jnp.dot(_shift_rows(xb, s), w_ref[k],
                            preferred_element_type=jnp.float32)
    return acc


def _channel_stats(acc):
    """Per-channel (sum, sum-of-squares) over rows of acc (L, C) -> (2, C)."""
    s1 = jnp.sum(acc, axis=0, keepdims=True)
    s2 = jnp.sum(acc * acc, axis=0, keepdims=True)
    return jnp.concatenate([s1, s2], axis=0)


# ---- kernel 1: conv1 + per-block BN1 partial statistics ---------------------------
def conv1_stats_kernel(x_ref, w1_ref, y_ref, s_ref, *, kernel_size, pad):
    # x_ref: (1, L, Cin) f32   w1_ref: (K, Cin, Cout) bf16
    # y_ref: (1, L, Cout) f32  s_ref: (1, 2, Cout) f32
    xb = x_ref[0].astype(jnp.bfloat16)
    acc = _conv1d_taps(xb, w1_ref, kernel_size, pad)   # (L, Cout) f32
    y_ref[0] = acc
    s_ref[0] = _channel_stats(acc)


# ---- kernel 2: BN1 + ELU + conv2 + per-block BN2 partial statistics ---------------
def bn_elu_conv2_stats_kernel(y1_ref, ss1_ref, w2_ref, y_ref, s_ref, *, kernel_size, pad):
    # y1_ref: (1, L, Cout) f32   ss1_ref: (2, Cout) f32 (row0 scale, row1 shift)
    # w2_ref: (K, Cout, Cout) bf16
    h = _elu(y1_ref[0] * ss1_ref[0:1, :] + ss1_ref[1:2, :])      # f32 BN + ELU
    acc = _conv1d_taps(h.astype(jnp.bfloat16), w2_ref, kernel_size, pad)
    y_ref[0] = acc
    s_ref[0] = _channel_stats(acc)


# ---- kernel 3: BN2 + residual (channel-pad) + final ELU ---------------------------
def bn_res_elu_kernel(y2_ref, ss2_ref, x_ref, o_ref, *, ch1, ch2):
    # y2_ref: (1, L, Cout) f32   ss2_ref: (2, Cout) f32   x_ref: (1, L, Cin) f32
    out = y2_ref[0] * ss2_ref[0:1, :] + ss2_ref[1:2, :]
    xres = x_ref[0]
    if ch1 or ch2:
        xres = jnp.pad(xres, ((0, 0), (ch1, ch2)))               # residual channel pad
    o_ref[0] = _elu(out + xres)


def _vmem_limit(per_step_bytes):
    cap = 64 * 1024 * 1024                       # conservative fallback (v7x per-TC)
    try:
        cap = int(getattr(pltpu.get_tpu_info(), "vmem_capacity_bytes", cap))
    except Exception:
        pass
    want = max(8 * per_step_bytes, 16 * 1024 * 1024)   # double-buffering + temps headroom
    return int(min(want, int(cap * 0.9)))


def resnet_block_1d(x_ncl, w1, w2, g1, b1, g2, b2, kernel_size, padding):
    """x_ncl: (N, Cin, L) PyTorch layout; w1: (Cout, Cin, K); w2: (Cout, Cout, K)."""
    N, Cin, L = x_ncl.shape
    Cout = w1.shape[0]
    K = kernel_size
    p1 = padding
    # NOTE: for even K this branch can never satisfy the same-length assertion below
    # (kept only to mirror the torch module's constructor).
    p2 = padding - 1 if K % 2 == 0 else padding
    assert Cout >= Cin, "residual channel-pad path requires out_channels >= in_channels"
    assert L + 2 * p1 - K + 1 == L and L + 2 * p2 - K + 1 == L, \
        "residual add requires 'same'-length convolutions"

    ch1 = (Cout - Cin) // 2
    ch2 = Cout - Cin - ch1
    eps = 1e-5
    inv_nl = 1.0 / (N * L)

    # TODO(synk): these NCL<->NLC transposes are wrapper-side layout plumbing; a real
    # model should keep activations NLC end-to-end.
    x_nlc = jnp.transpose(x_ncl, (0, 2, 1)).astype(jnp.float32)          # (N, L, Cin)
    w1_t = jnp.transpose(w1, (2, 1, 0)).astype(jnp.bfloat16)             # (K, Cin, Cout)
    w2_t = jnp.transpose(w2, (2, 1, 0)).astype(jnp.bfloat16)             # (K, Cout, Cout)

    def scale_shift(stats, g, b):
        # stats: (N, 2, Cout) per-block (sum, sumsq) -> folded BN scale/shift (2, Cout)
        s = jnp.sum(stats, axis=0)
        mean = s[0] * inv_nl
        var = jnp.maximum(s[1] * inv_nl - mean * mean, 0.0)
        scale = g.astype(jnp.float32) * lax.rsqrt(var + eps)
        shift = b.astype(jnp.float32) - mean * scale
        return jnp.stack([scale, shift], axis=0)

    # BlockSpecs: grid over the batch axis, one batch element per step.
    blk_x = pl.BlockSpec((1, L, Cin), lambda n: (n, 0, 0))
    blk_y = pl.BlockSpec((1, L, Cout), lambda n: (n, 0, 0))
    blk_s = pl.BlockSpec((1, 2, Cout), lambda n: (n, 0, 0))
    blk_w1 = pl.BlockSpec((K, Cin, Cout), lambda n: (0, 0, 0))
    blk_w2 = pl.BlockSpec((K, Cout, Cout), lambda n: (0, 0, 0))
    blk_ss = pl.BlockSpec((2, Cout), lambda n: (0, 0))

    def cparams(per_step_bytes):
        return pltpu.CompilerParams(
            dimension_semantics=("parallel",),
            vmem_limit_bytes=_vmem_limit(per_step_bytes))

    # ---- pass 1: conv1 + BN1 partial stats
    per_step1 = L * Cin * 4 + K * Cin * Cout * 2 + L * Cout * 4 + 2 * Cout * 4
    y1, st1 = pl.pallas_call(
        functools.partial(conv1_stats_kernel, kernel_size=K, pad=p1),
        grid=(N,),
        in_specs=[blk_x, blk_w1],
        out_specs=(blk_y, blk_s),
        out_shape=(jax.ShapeDtypeStruct((N, L, Cout), jnp.float32),
                   jax.ShapeDtypeStruct((N, 2, Cout), jnp.float32)),
        compiler_params=cparams(per_step1),
        cost_estimate=pl.CostEstimate(
            flops=2 * N * L * K * Cin * Cout,
            transcendentals=0,
            bytes_accessed=N * L * (Cin + Cout) * 4 + K * Cin * Cout * 2 + N * 2 * Cout * 4),
    )(x_nlc, w1_t)

    ss1 = scale_shift(st1, g1, b1)

    # ---- pass 2: BN1 + ELU + conv2 + BN2 partial stats
    per_step2 = 2 * L * Cout * 4 + K * Cout * Cout * 2 + 2 * Cout * 4 * 2
    y2, st2 = pl.pallas_call(
        functools.partial(bn_elu_conv2_stats_kernel, kernel_size=K, pad=p2),
        grid=(N,),
        in_specs=[blk_y, blk_ss, blk_w2],
        out_specs=(blk_y, blk_s),
        out_shape=(jax.ShapeDtypeStruct((N, L, Cout), jnp.float32),
                   jax.ShapeDtypeStruct((N, 2, Cout), jnp.float32)),
        compiler_params=cparams(per_step2),
        cost_estimate=pl.CostEstimate(
            flops=2 * N * L * K * Cout * Cout + 6 * N * L * Cout,
            transcendentals=N * L * Cout,
            bytes_accessed=2 * N * L * Cout * 4 + K * Cout * Cout * 2
                           + (N * 2 + 2) * Cout * 4),
    )(y1, ss1, w2_t)

    ss2 = scale_shift(st2, g2, b2)

    # ---- pass 3: BN2 + residual + final ELU
    per_step3 = 2 * L * Cout * 4 + L * Cin * 4 + 2 * Cout * 4
    out_nlc = pl.pallas_call(
        functools.partial(bn_res_elu_kernel, ch1=ch1, ch2=ch2),
        grid=(N,),
        in_specs=[blk_y, blk_ss, blk_x],
        out_specs=blk_y,
        out_shape=jax.ShapeDtypeStruct((N, L, Cout), jnp.float32),
        compiler_params=cparams(per_step3),
        cost_estimate=pl.CostEstimate(
            flops=6 * N * L * Cout,
            transcendentals=N * L * Cout,
            bytes_accessed=2 * N * L * Cout * 4 + N * L * Cin * 4 + 2 * Cout * 4),
    )(y2, ss2, x_nlc)

    return jnp.transpose(out_nlc, (0, 2, 1))                             # back to NCL


def ref_forward(x_ncl, w1, w2, g1, b1, g2, b2, kernel_size, padding):
    """Pure-JAX reference mirroring the torch forward (training-mode BN) with the
    same precision policy as the kernels: bf16 matmul operands, f32 accumulation,
    f32 BN / ELU / residual math."""
    K = kernel_size
    p2 = padding - 1 if K % 2 == 0 else padding
    eps = 1e-5
    dn = ('NCH', 'OIH', 'NCH')
    bf = jnp.bfloat16

    def bn(y, g, b):
        mu = jnp.mean(y, axis=(0, 2), keepdims=True)
        var = jnp.mean((y - mu) ** 2, axis=(0, 2), keepdims=True)
        return (y - mu) * lax.rsqrt(var + eps) * g[None, :, None] + b[None, :, None]

    out = lax.conv_general_dilated(x_ncl.astype(bf), w1.astype(bf), (1,),
                                   [(padding, padding)], dimension_numbers=dn,
                                   preferred_element_type=jnp.float32)
    out = _elu(bn(out, g1, b1))
    out = lax.conv_general_dilated(out.astype(bf), w2.astype(bf), (1,),
                                   [(p2, p2)], dimension_numbers=dn,
                                   preferred_element_type=jnp.float32)
    out = bn(out, g2, b2)
    Cin, Cout = x_ncl.shape[1], w1.shape[0]
    residual = x_ncl
    if Cout != Cin:
        ch1 = (Cout - Cin) // 2
        ch2 = Cout - Cin - ch1
        residual = jnp.pad(x_ncl, ((0, 0), (ch1, ch2), (0, 0)))
    return _elu(out + residual)


if __name__ == "__main__":
    N, Cin, Cout, L, K, P = 2, 8, 16, 16, 3, 1
    key = jax.random.PRNGKey(0)
    k1, k2, k3 = jax.random.split(key, 3)
    x = jax.random.normal(k1, (N, Cin, L), jnp.float32)
    w1 = jax.random.normal(k2, (Cout, Cin, K), jnp.float32) * 0.1
    w2 = jax.random.normal(k3, (Cout, Cout, K), jnp.float32) * 0.1
    # BatchNorm default init: gamma = 1, beta = 0 (deterministic)
    g1 = jnp.ones((Cout,), jnp.float32)
    b1 = jnp.zeros((Cout,), jnp.float32)
    g2 = jnp.ones((Cout,), jnp.float32)
    b2 = jnp.zeros((Cout,), jnp.float32)

    out = resnet_block_1d(x, w1, w2, g1, b1, g2, b2, K, P)
    out = jax.block_until_ready(out)

    ref = ref_forward(x, w1, w2, g1, b1, g2, b2, K, P)
    assert out.shape == (N, Cout, L)
    assert jnp.allclose(out, ref, atol=5e-3, rtol=5e-3), \
        float(jnp.max(jnp.abs(out - ref)))
    print("KERNEL_OK")
</pallas_src>

<mosaic_0001>
module attributes {stable_mosaic.version = 11 : i64} {
  func.func @conv1_stats_kernel(%arg0: i32, %arg1: memref<1x16x8xf32, #tpu.memory_space<vmem>>, %arg2: memref<3x8x16xbf16, #tpu.memory_space<vmem>>, %arg3: memref<1x16x16xf32, #tpu.memory_space<vmem>>, %arg4: memref<1x2x16xf32, #tpu.memory_space<vmem>>) attributes {dimension_semantics = [#tpu.dimension_semantics<parallel>], iteration_bounds = array<i64: 2>, scalar_prefetch = 0 : i64, scratch_operands = 0 : i64, tpu.core_type = #tpu.core_type<tc>, window_params = [{transform_indices = @transform_0, window_bounds = array<i64: 1, 16, 8>}, {pipeline_mode = #tpu.pipeline_mode<synchronous>, transform_indices = @transform_1, window_bounds = array<i64: 3, 8, 16>}, {transform_indices = @transform_2, window_bounds = array<i64: 1, 16, 16>}, {transform_indices = @transform_3, window_bounds = array<i64: 1, 2, 16>}]} {
    %c0 = arith.constant 0 : index
    %c0_0 = arith.constant 0 : index
    %c0_1 = arith.constant 0 : index
    %0 = vector.load %arg1[%c0, %c0_0, %c0_1] : memref<1x16x8xf32, #tpu.memory_space<vmem>>, vector<1x16x8xf32>
    %1 = vector.shape_cast %0 : vector<1x16x8xf32> to vector<16x8xf32>
    %2 = arith.truncf %1 : vector<16x8xf32> to vector<16x8xbf16>
    %cst = arith.constant 0.000000e+00 : f32
    %3 = vector.broadcast %cst : f32 to vector<16x16xf32>
    %cst_2 = arith.constant 0.000000e+00 : bf16
    %4 = vector.broadcast %cst_2 : bf16 to vector<1x8xbf16>
    %5 = vector.extract_strided_slice %2 {offsets = [0, 0], sizes = [15, 8], strides = [1, 1]} : vector<16x8xbf16> to vector<15x8xbf16>
    %6 = tpu.concatenate %4, %5 in 0 : vector<1x8xbf16>, vector<15x8xbf16> -> vector<16x8xbf16>
    %c0_3 = arith.constant 0 : index
    %c0_4 = arith.constant 0 : index
    %c0_5 = arith.constant 0 : index
    %7 = vector.load %arg2[%c0_3, %c0_4, %c0_5] : memref<3x8x16xbf16, #tpu.memory_space<vmem>>, vector<1x8x16xbf16>
    %8 = vector.shape_cast %7 : vector<1x8x16xbf16> to vector<8x16xbf16>
    %cst_6 = arith.constant dense<0.000000e+00> : vector<16x16xf32>
    %9 = tpu.matmul %6, %8, %cst_6 {dimension_numbers = #tpu.dot_dimension_numbers<[1], [0], [0], [1], [0, 0, 1, 1], [], []>} : vector<16x8xbf16>, vector<8x16xbf16>, vector<16x16xf32> -> vector<16x16xf32>
    %10 = arith.addf %3, %9 : vector<16x16xf32>
    %c1 = arith.constant 1 : index
    %c0_7 = arith.constant 0 : index
    %c0_8 = arith.constant 0 : index
    %11 = vector.load %arg2[%c1, %c0_7, %c0_8] : memref<3x8x16xbf16, #tpu.memory_space<vmem>>, vector<1x8x16xbf16>
    %12 = vector.shape_cast %11 : vector<1x8x16xbf16> to vector<8x16xbf16>
    %cst_9 = arith.constant dense<0.000000e+00> : vector<16x16xf32>
    %13 = tpu.matmul %2, %12, %cst_9 {dimension_numbers = #tpu.dot_dimension_numbers<[1], [0], [0], [1], [0, 0, 1, 1], [], []>} : vector<16x8xbf16>, vector<8x16xbf16>, vector<16x16xf32> -> vector<16x16xf32>
    %14 = arith.addf %10, %13 : vector<16x16xf32>
    %cst_10 = arith.constant 0.000000e+00 : bf16
    %15 = vector.broadcast %cst_10 : bf16 to vector<1x8xbf16>
    %16 = vector.extract_strided_slice %2 {offsets = [1, 0], sizes = [15, 8], strides = [1, 1]} : vector<16x8xbf16> to vector<15x8xbf16>
    %17 = tpu.concatenate %16, %15 in 0 : vector<15x8xbf16>, vector<1x8xbf16> -> vector<16x8xbf16>
    %c2 = arith.constant 2 : index
    %c0_11 = arith.constant 0 : index
    %c0_12 = arith.constant 0 : index
    %18 = vector.load %arg2[%c2, %c0_11, %c0_12] : memref<3x8x16xbf16, #tpu.memory_space<vmem>>, vector<1x8x16xbf16>
    %19 = vector.shape_cast %18 : vector<1x8x16xbf16> to vector<8x16xbf16>
    %cst_13 = arith.constant dense<0.000000e+00> : vector<16x16xf32>
    %20 = tpu.matmul %17, %19, %cst_13 {dimension_numbers = #tpu.dot_dimension_numbers<[1], [0], [0], [1], [0, 0, 1, 1], [], []>} : vector<16x8xbf16>, vector<8x16xbf16>, vector<16x16xf32> -> vector<16x16xf32>
    %21 = arith.addf %14, %20 : vector<16x16xf32>
    %c0_14 = arith.constant 0 : index
    %c0_15 = arith.constant 0 : index
    %c0_16 = arith.constant 0 : index
    %22 = vector.load %arg3[%c0_14, %c0_15, %c0_16] : memref<1x16x16xf32, #tpu.memory_space<vmem>>, vector<1x16x16xf32>
    %23 = vector.shape_cast %22 : vector<1x16x16xf32> to vector<16x16xf32>
    %24 = vector.shape_cast %21 : vector<16x16xf32> to vector<1x16x16xf32>
    tpu.vector_store %arg3[%c0_14, %c0_15, %c0_16], %24 {strides = array<i32>} : memref<1x16x16xf32, #tpu.memory_space<vmem>>, vector<1x16x16xf32>,
    %cst_17 = arith.constant dense<0.000000e+00> : vector<16xf32>
    %25 = vector.multi_reduction <add>, %21, %cst_17 [0] : vector<16x16xf32> to vector<16xf32>
    %26 = vector.shape_cast %25 : vector<16xf32> to vector<1x16xf32>
    %27 = arith.mulf %21, %21 : vector<16x16xf32>
    %cst_18 = arith.constant dense<0.000000e+00> : vector<16xf32>
    %28 = vector.multi_reduction <add>, %27, %cst_18 [0] : vector<16x16xf32> to vector<16xf32>
    %29 = vector.shape_cast %28 : vector<16xf32> to vector<1x16xf32>
    %30 = tpu.concatenate %26, %29 in 0 : vector<1x16xf32>, vector<1x16xf32> -> vector<2x16xf32>
    %c0_19 = arith.constant 0 : index
    %c0_20 = arith.constant 0 : index
    %c0_21 = arith.constant 0 : index
    %31 = vector.load %arg4[%c0_19, %c0_20, %c0_21] : memref<1x2x16xf32, #tpu.memory_space<vmem>>, vector<1x2x16xf32>
    %32 = vector.shape_cast %31 : vector<1x2x16xf32> to vector<2x16xf32>
    %33 = vector.shape_cast %30 : vector<2x16xf32> to vector<1x2x16xf32>
    tpu.vector_store %arg4[%c0_19, %c0_20, %c0_21], %33 {strides = array<i32>} : memref<1x2x16xf32, #tpu.memory_space<vmem>>, vector<1x2x16xf32>,
    return
  }
  func.func @transform_0(%arg0: i32) -> (i32, i32, i32) {
    %c0_i32 = arith.constant 0 : i32
    %c0_i32_0 = arith.constant 0 : i32
    %c0_i32_1 = arith.constant 0 : i32
    return %arg0, %c0_i32, %c0_i32_0 : i32, i32, i32
  }
  func.func @transform_1(%arg0: i32) -> (i32, i32, i32) {
    %c0_i32 = arith.constant 0 : i32
    %c0_i32_0 = arith.constant 0 : i32
    %c0_i32_1 = arith.constant 0 : i32
    %c0_i32_2 = arith.constant 0 : i32
    return %c0_i32, %c0_i32_0, %c0_i32_1 : i32, i32, i32
  }
  func.func @transform_2(%arg0: i32) -> (i32, i32, i32) {
    %c0_i32 = arith.constant 0 : i32
    %c0_i32_0 = arith.constant 0 : i32
    %c0_i32_1 = arith.constant 0 : i32
    return %arg0, %c0_i32, %c0_i32_0 : i32, i32, i32
  }
  func.func @transform_3(%arg0: i32) -> (i32, i32, i32) {
    %c0_i32 = arith.constant 0 : i32
    %c0_i32_0 = arith.constant 0 : i32
    %c0_i32_1 = arith.constant 0 : i32
    return %arg0, %c0_i32, %c0_i32_0 : i32, i32, i32
  }
}

</mosaic_0001>

<llo_original>
// kernel: tpu_custom_call.1
$region0: #{tpu_custom_call.1}
  #allocation0 [shape = 'u32[]', space=smem, size = 0x4, offset = 0x4, fixed_abs, tag = 'smem constant byte address 0x4 - core index']
  #allocation1 [shape = 'u32[144,128]{1,0:T(1,128)}', space=vmem, size = 0x12000, scoped, tag = 'internal scratch']
  %s0 = inlined_call_operand.vmem [shape: f32[2,16,8], index: 0, kind: input, shape index: {}]
  %s1 = inlined_call_operand.vmem [shape: bf16[3,8,16], index: 1, kind: input, shape index: {}]
  %s2 = inlined_call_operand.hbm [shape: f32[2,16,16], index: 2, kind: output, shape index: {0}]
  %s3 = inlined_call_operand.hbm [shape: f32[2,2,16], index: 3, kind: output, shape index: {1}]
  %4 = xla_tuple %s2, %s3
  %s5 = sld [smem:[#allocation0]]
  $region49: #{tpu_custom_call.1} parent=0
    _
  %s7 = ssub.s32 1, %s5
  %s8 = scalar_select 0, %s7, %s5
  $region1: #{tpu_custom_call.1} parent=0
    #allocation2 [shape = 'u8[16384]{0}', space=vmem, size = 0x4000, scoped, tag = 'output window, operand 0']
    #allocation3 [shape = 's32[2]{0}', space=sflag, size = 0x8, scoped, tag = 'scoped memory for tpu_custom_call.1']
    #allocation4 [shape = 'u8[2048]{0}', space=vmem, size = 0x800, scoped, tag = 'output window, operand 1']
    #allocation5 [shape = 's32[2]{0}', space=sflag, size = 0x8, scoped, tag = 'scoped memory for tpu_custom_call.1']
    %9 = vsyncpa [#allocation3], 0
    %s10 = scalar_lea.sflag [#allocation3], 1
    %11 = vsyncpa %s10, 0
    %12 = vsyncpa [#allocation5], 0
    %s13 = scalar_lea.sflag [#allocation5], 1
    %14 = vsyncpa %s13, 0
    loop: start=0, step=1, limit=4
    $region2: #{tpu_custom_call.1} parent=1 // loop_pre_header
      _
    $region3: #{tpu_custom_call.1} parent=1 // loop_header
      %s16 = sphi 0, %s20
      %p17 = scmp.ge.s32.totalorder %s16, 4
      %s26 = sphi 0, %s28
      %s29 = sphi 0, %s26
      %s30 = sphi 0, %s29
      %s46 = sphi 0, %s30
      %s50 = sphi 0, %s50
      %s52 = sphi 0, %s50
      %s53 = sphi 0, %s52
      %s67 = sphi 0, %s53
      %s73 = sphi 0, %s75
      %s76 = sphi 0, %s73
      %s77 = sphi 0, %s76
      %s93 = sphi 0, %s77
      %s99 = sphi 0, %s101
      %s102 = sphi 0, %s99
      %s103 = sphi 0, %s102
      %s119 = sphi 0, %s103
    $region4: #{tpu_custom_call.1} parent=1 // loop_header_branch
      %19 = sbr.rel (%p17) target = $region8
    $region5: #{tpu_custom_call.1} parent=1 // loop_body
      %s21 = ssub.s32 %s16, 1
      %s22 = ssub.s32 %s16, 2
      %s23 = sadd.s32 %s16, 1
      %s24 = ssub.s32 %s16, %s23
      %p25 = scmp.eq.s32.totalorder %s24, 0
      %s27 = sadd.s32 %s26, 1
      %s28 = scalar_select %p25, %s26, %s27
      %p31 = pneg %p25
      %p32 = scmp.eq.s32.totalorder %s16, 1
      %p33 = por %p31, %p32
      %p34 = scmp.ne.s32.totalorder %s26, %s29
      %p35 = scmp.eq.s32.totalorder %s16, 0
      %p36 = por %p34, %p35
      %p37 = scmp.ne.s32.totalorder %s26, %s29
      %p38 = scmp.eq.s32.totalorder %s21, 1
      %p39 = por %p37, %p38
      %p40 = scmp.ne.s32.totalorder %s29, %s30
      %p41 = scmp.eq.s32.totalorder %s21, 0
      %p42 = por %p40, %p41
      %p43 = scmp.ne.s32.totalorder %s29, %s30
      %p44 = scmp.eq.s32.totalorder %s22, 1
      %p45 = por %p43, %p44
      %p47 = scmp.ne.s32.totalorder %s30, %s46
      %p48 = scmp.eq.s32.totalorder %s22, 0
      %p49 = por %p47, %p48
      %s51 = sadd.s32 %s50, 1
      %p54 = scmp.eq.s32.totalorder %s16, 1
      %p55 = scmp.ne.s32.totalorder %s50, %s52
      %p56 = scmp.eq.s32.totalorder %s16, 0
      %p57 = por %p55, %p56
      %p58 = scmp.ne.s32.totalorder %s50, %s52
      %p59 = scmp.eq.s32.totalorder %s21, 1
      %p60 = por %p58, %p59
      %p61 = scmp.ne.s32.totalorder %s52, %s53
      %p62 = scmp.eq.s32.totalorder %s21, 0
      %p63 = por %p61, %p62
      %p64 = scmp.ne.s32.totalorder %s52, %s53
      %p65 = scmp.eq.s32.totalorder %s22, 1
      %p66 = por %p64, %p65
      %p68 = scmp.ne.s32.totalorder %s53, %s67
      %p69 = scmp.eq.s32.totalorder %s22, 0
      %p70 = por %p68, %p69
      %s71 = ssub.s32 %s16, %s23
      %p72 = scmp.eq.s32.totalorder %s71, 0
      %s74 = sadd.s32 %s73, 1
      %s75 = scalar_select %p72, %s73, %s74
      %p78 = pneg %p72
      %p79 = scmp.eq.s32.totalorder %s16, 1
      %p80 = por %p78, %p79
      %p81 = scmp.ne.s32.totalorder %s73, %s76
      %p82 = scmp.eq.s32.totalorder %s16, 0
      %p83 = por %p81, %p82
      %p84 = scmp.ne.s32.totalorder %s73, %s76
      %p85 = scmp.eq.s32.totalorder %s21, 1
      %p86 = por %p84, %p85
      %p87 = scmp.ne.s32.totalorder %s76, %s77
      %p88 = scmp.eq.s32.totalorder %s21, 0
      %p89 = por %p87, %p88
      %p90 = scmp.ne.s32.totalorder %s76, %s77
      %p91 = scmp.eq.s32.totalorder %s22, 1
      %p92 = por %p90, %p91
      %p94 = scmp.ne.s32.totalorder %s77, %s93
      %p95 = scmp.eq.s32.totalorder %s22, 0
      %p96 = por %p94, %p95
      %s97 = ssub.s32 %s16, %s23
      %p98 = scmp.eq.s32.totalorder %s97, 0
      %s100 = sadd.s32 %s99, 1
      %s101 = scalar_select %p98, %s99, %s100
      %p104 = pneg %p98
      %p105 = scmp.eq.s32.totalorder %s16, 1
      %p106 = por %p104, %p105
      %p107 = scmp.ne.s32.totalorder %s99, %s102
      %p108 = scmp.eq.s32.totalorder %s16, 0
      %p109 = por %p107, %p108
      %p110 = scmp.ne.s32.totalorder %s99, %s102
      %p111 = scmp.eq.s32.totalorder %s21, 1
      %p112 = por %p110, %p111
      %p113 = scmp.ne.s32.totalorder %s102, %s103
      %p114 = scmp.eq.s32.totalorder %s21, 0
      %p115 = por %p113, %p114
      %p116 = scmp.ne.s32.totalorder %s102, %s103
      %p117 = scmp.eq.s32.totalorder %s22, 1
      %p118 = por %p116, %p117
      %p120 = scmp.ne.s32.totalorder %s103, %s119
      %p121 = scmp.eq.s32.totalorder %s22, 0
      %p122 = por %p120, %p121
      %p123 = scmp.le.s32.totalorder 1, %s16
      %p124 = scmp.lt.s32.totalorder %s16, 3
      %p125 = pnand %p123, %p124
      %p126 = pneg %p125
      // Predicated region
      $region9: #{tpu_custom_call.1} parent=5 // pred_check
        _
      $region10: #{tpu_custom_call.1} parent=5 // pred_check_branch
        %128 = sbr.rel (%p125) target = $region12
      $region11: #{tpu_custom_call.1} parent=5 // pred_region
        %s129 = ssub.s32 %s16, 1
        // Predicated region
        $region13: #{tpu_custom_call.1} parent=11 // pred_check
          %p130 = pneg %p63
        $region14: #{tpu_custom_call.1} parent=11 // pred_check_branch
          %132 = sbr.rel (%p130) target = $region16
        $region15: #{tpu_custom_call.1} parent=11 // pred_region
          _
        $region16: #{tpu_custom_call.1} parent=11 // pred_fallthru
          _
      $region12: #{tpu_custom_call.1} parent=5 // pred_fallthru
        _
      %p133 = scmp.lt.s32.totalorder %s16, 2
      // Predicated region
      $region17: #{tpu_custom_call.1} parent=5 // pred_check
        %p134 = pneg %p133
      $region18: #{tpu_custom_call.1} parent=5 // pred_check_branch
        %136 = sbr.rel (%p134) target = $region20
      $region19: #{tpu_custom_call.1} parent=5 // pred_region
        // Predicated region
        $region21: #{tpu_custom_call.1} parent=19 // pred_check
          %p137 = pneg %p36
        $region22: #{tpu_custom_call.1} parent=19 // pred_check_branch
          %139 = sbr.rel (%p137) target = $region24
        $region23: #{tpu_custom_call.1} parent=19 // pred_region
          %p140 = scmp.lt.s32.totalorder %s16, 1
          %s141 = scalar_select %p140, %s16, 1
          %s142 = smul.addr %s141, 2
          %s143 = smul.addr %s142, 8
          %s144 = scalar_lea.vmem %s0, %s143
        $region24: #{tpu_custom_call.1} parent=19 // pred_fallthru
          _
      $region20: #{tpu_custom_call.1} parent=5 // pred_fallthru
        _
      %p145 = scmp.le.s32.totalorder 1, %s16
      %p146 = scmp.lt.s32.totalorder %s16, 3
      %p147 = pnand %p145, %p146
      %p148 = pneg %p147
      // Predicated region
      $region25: #{tpu_custom_call.1} parent=5 // pred_check
        _
      $region26: #{tpu_custom_call.1} parent=5 // pred_check_branch
        %150 = sbr.rel (%p147) target = $region28
      $region27: #{tpu_custom_call.1} parent=5 // pred_region
        %s151 = ssub.s32 %s16, 1
        %p152 = scmp.lt.s32.totalorder %s21, 1
        %s153 = scalar_select %p152, %s21, 1
        %s154 = smul.addr %s153, 2
        %s155 = smul.addr %s154, 8
        %s156 = scalar_lea.vmem %s0, %s155
        %p157 = pneg %p42
        %p158 = pneg %p39
        %p159 = pneg %p63
        %p160 = pneg %p60
        %p161 = pneg %p89
        %p162 = pneg %p86
        %s163 = sand.u32 %s76, 1
        %s164 = scalar_lea.sflag [#allocation3], %s163
        %s165 = sand.u32 %s76, 1
        %s166 = smul.addr %s165, 16
        %s167 = scalar_lea.vmem [#allocation2], %s166
        %p168 = pneg %p115
        %p169 = pneg %p112
        %s170 = sand.u32 %s102, 1
        %s171 = scalar_lea.sflag [#allocation5], %s170
        %s172 = sand.u32 %s102, 1
        %s173 = smul.addr %s172, 2
        %s174 = scalar_lea.vmem [#allocation4], %s173
        %p175 = scmp.lt.s32.totalorder %s21, 1
        %s176 = scalar_select %p175, %s21, 1
        %s177 = smul.addr %s176, 2
        %s178 = smul.addr %s177, 8
        %s179 = scalar_lea.vmem %s0, %s178
        %v181 = vld [vmem:[%s179] sm:$0xff]
        %v182 = vld [vmem:[%s179 + $0x8] sm:$0xff]
        %v183 = vpack.c.bf16 %v182, %v181
        %v185 = vshrl.u32 %v183, 16
        %v187 = vrot.slane %v185, 7
        %v188 = vshll.u32 %v183, 16
        %v190 = vor.u32 %v187, %v188
        %vm192 = vcmask 1040384
        %vm193 = vsmask.f32 256
        %vm194 = vmand %vm192, %vm193
        %v195 = vsel %vm194, 0, %v190
        %v196 = vld [vmem:[%s1] sm:$0xf]
        %s197 = scalar_lea.vmem %s1, 4
        %v198 = vld [vmem:[%s197] sm:$0xf]
        %vm199 = vcmask 64512
        %v200 = vsel %vm199, %v183, 0
        %vm202 = vcmask 1043456
        %v204 = vsel %vm202, %v198, 0
        %206 = vmatprep.subr.bf16.mxu0 0
        %207 = vmatpush1.bf16.msra.mxu0 0
        %208 = vmatprep.subr.bf16.mxu0 0
        %209 = vmatpush1.bf16.msra.mxu0 0
        %210 = vmatprep.subr.bf16.mxu0 0
        %211 = vmatpush1.bf16.msra.mxu0 0
        %212 = vmatprep.subr.bf16.mxu0 0
        %213 = vmatpush1.bf16.msra.mxu0 0
        %214 = vmatprep.subr.bf16.mxu0 0
        %215 = vmatpush1.bf16.msra.mxu0 0
        %216 = vmatprep.subr.bf16.mxu0 0
        %217 = vmatpush1.bf16.msra.mxu0 0
        %218 = vmatprep.subr.bf16.mxu0 0
        %219 = vmatpush1.bf16.msra.mxu0 0
        %220 = vmatprep.subr.bf16.mxu0 0
        %221 = vmatpush1.bf16.msra.mxu0 %v204
        %222 = vmatprep.subr.bf16.mxu0 0
        %223 = vmatpush2.bf16.msra.mxu0 0
        %224 = vmatprep.subr.bf16.mxu0 0
        %225 = vmatpush2.bf16.msra.mxu0 0
        %226 = vmatprep.subr.bf16.mxu0 0
        %227 = vmatpush2.bf16.msra.mxu0 0
        %228 = vmatprep.subr.bf16.mxu0 0
        %229 = vmatpush2.bf16.msra.mxu0 0
        %230 = vmatprep.subr.bf16.mxu0 0
        %231 = vmatpush2.bf16.msra.mxu0 0
        %232 = vmatprep.subr.bf16.mxu0 0
        %233 = vmatpush2.bf16.msra.mxu0 0
        %234 = vmatprep.subr.bf16.mxu0 0
        %235 = vmatpush2.bf16.msra.mxu0 0
        %236 = vmatprep.subr.bf16.mxu0 0
        %237 = vmatpush2.bf16.msra.mxu0 0
        %238 = vmatprep.mubr.bf16.mxu0 0
        %239 = vmatmul.mubr.bf16.gmra.mxu0 %v200
        %v240 = vpop.f32.mrf.mxu0
        %v241 = vadd.f32 0.0, %v240
        %v242 = vpop.f32.mrf.mxu0
        %v243 = vpop.f32.mrf.mxu0
        %v244 = vadd.f32 0.0, %v243
        %v245 = vpop.f32.mrf.mxu0
        %246 = vdwg.mxu0
        %v248 = vsel %vm199, %v195, 0
        %v251 = vsel %vm202, %v196, 0
        %253 = vmatprep.subr.bf16.mxu0 0
        %254 = vmatpush1.bf16.msra.mxu0 0
        %255 = vmatprep.subr.bf16.mxu0 0
        %256 = vmatpush1.bf16.msra.mxu0 0
        %257 = vmatprep.subr.bf16.mxu0 0
        %258 = vmatpush1.bf16.msra.mxu0 0
        %259 = vmatprep.subr.bf16.mxu0 0
        %260 = vmatpush1.bf16.msra.mxu0 0
        %261 = vmatprep.subr.bf16.mxu0 0
        %262 = vmatpush1.bf16.msra.mxu0 0
        %263 = vmatprep.subr.bf16.mxu0 0
        %264 = vmatpush1.bf16.msra.mxu0 0
        %265 = vmatprep.subr.bf16.mxu0 0
        %266 = vmatpush1.bf16.msra.mxu0 0
        %267 = vmatprep.subr.bf16.mxu0 0
        %268 = vmatpush1.bf16.msra.mxu0 %v251
        %269 = vmatprep.subr.bf16.mxu0 0
        %270 = vmatpush2.bf16.msra.mxu0 0
        %271 = vmatprep.subr.bf16.mxu0 0
        %272 = vmatpush2.bf16.msra.mxu0 0
        %273 = vmatprep.subr.bf16.mxu0 0
        %274 = vmatpush2.bf16.msra.mxu0 0
        %275 = vmatprep.subr.bf16.mxu0 0
        %276 = vmatpush2.bf16.msra.mxu0 0
        %277 = vmatprep.subr.bf16.mxu0 0
        %278 = vmatpush2.bf16.msra.mxu0 0
        %279 = vmatprep.subr.bf16.mxu0 0
        %280 = vmatpush2.bf16.msra.mxu0 0
        %281 = vmatprep.subr.bf16.mxu0 0
        %282 = vmatpush2.bf16.msra.mxu0 0
        %283 = vmatprep.subr.bf16.mxu0 0
        %284 = vmatpush2.bf16.msra.mxu0 0
        %285 = vmatprep.mubr.bf16.mxu0 0
        %286 = vmatmul.mubr.bf16.gmra.mxu0 %v248
        %v287 = vpop.f32.mrf.mxu0
        %v288 = vadd.f32 %v241, %v287
        %v289 = vpop.f32.mrf.mxu0
        %v290 = vpop.f32.mrf.mxu0
        %v291 = vadd.f32 %v244, %v290
        %v292 = vpop.f32.mrf.mxu0
        %293 = vdwg.mxu0
        %v294 = vrot.slane %v188, 1
        %v295 = vor.u32 %v185, %v294
        %vm297 = vcmask 1047552
        %vm298 = vsmask.f32 7424
        %vm299 = vmand %vm297, %vm298
        %v300 = vsel %vm299, %v295, 0
        %s301 = scalar_lea.vmem %s1, 8
        %v302 = vld [vmem:[%s301] sm:$0xf]
        %v304 = vsel %vm199, %v300, 0
        %v307 = vsel %vm202, %v302, 0
        %309 = vmatprep.subr.bf16.mxu0 0
        %310 = vmatpush1.bf16.msra.mxu0 0
        %311 = vmatprep.subr.bf16.mxu0 0
        %312 = vmatpush1.bf16.msra.mxu0 0
        %313 = vmatprep.subr.bf16.mxu0 0
        %314 = vmatpush1.bf16.msra.mxu0 0
        %315 = vmatprep.subr.bf16.mxu0 0
        %316 = vmatpush1.bf16.msra.mxu0 0
        %317 = vmatprep.subr.bf16.mxu0 0
        %318 = vmatpush1.bf16.msra.mxu0 0
        %319 = vmatprep.subr.bf16.mxu0 0
        %320 = vmatpush1.bf16.msra.mxu0 0
        %321 = vmatprep.subr.bf16.mxu0 0
        %322 = vmatpush1.bf16.msra.mxu0 0
        %323 = vmatprep.subr.bf16.mxu0 0
        %324 = vmatpush1.bf16.msra.mxu0 %v307
        %325 = vmatprep.subr.bf16.mxu0 0
        %326 = vmatpush2.bf16.msra.mxu0 0
        %327 = vmatprep.subr.bf16.mxu0 0
        %328 = vmatpush2.bf16.msra.mxu0 0
        %329 = vmatprep.subr.bf16.mxu0 0
        %330 = vmatpush2.bf16.msra.mxu0 0
        %331 = vmatprep.subr.bf16.mxu0 0
        %332 = vmatpush2.bf16.msra.mxu0 0
        %333 = vmatprep.subr.bf16.mxu0 0
        %334 = vmatpush2.bf16.msra.mxu0 0
        %335 = vmatprep.subr.bf16.mxu0 0
        %336 = vmatpush2.bf16.msra.mxu0 0
        %337 = vmatprep.subr.bf16.mxu0 0
        %338 = vmatpush2.bf16.msra.mxu0 0
        %339 = vmatprep.subr.bf16.mxu0 0
        %340 = vmatpush2.bf16.msra.mxu0 0
        %341 = vmatprep.mubr.bf16.mxu0 0
        %342 = vmatmul.mubr.bf16.gmra.mxu0 %v304
        %v343 = vpop.f32.mrf.mxu0
        %v344 = vadd.f32 0.0, %v343
        %v345 = vpop.f32.mrf.mxu0
        %v346 = vpop.f32.mrf.mxu0
        %v347 = vadd.f32 0.0, %v346
        %v348 = vpop.f32.mrf.mxu0
        %349 = vdwg.mxu0
        %v350 = vadd.f32 %v288, %v344
        %v351 = vadd.f32 %v291, %v347
        %vm352 = vcmask 130048
        %353 = vst.msk [vmem:[%s167] sm:$0xff] %vm352, %v350
        %354 = vst.msk [vmem:[%s167 + $0x8] sm:$0xff] %vm352, %v351
        %v355 = vsel %vm352, %v350, 0.0
        %v356 = vsel %vm352, %v351, 0.0
        %v357 = vadd.f32 %v355, %v356
        %v358 = vrot.slane %v357, 4
        %v359 = vadd.f32 %v357, %v358
        %v360 = vrot.slane %v359, 2
        %v361 = vadd.f32 %v359, %v360
        %v362 = vrot.slane %v361, 1
        %v363 = vadd.f32 %v361, %v362
        %v364 = vmul.f32 %v350, %v350
        %v365 = vmul.f32 %v351, %v351
        %v366 = vsel %vm352, %v364, 0.0
        %v367 = vsel %vm352, %v365, 0.0
        %v368 = vadd.f32 %v366, %v367
        %v369 = vrot.slane %v368, 4
        %v370 = vadd.f32 %v368, %v369
        %v371 = vrot.slane %v370, 2
        %v372 = vadd.f32 %v370, %v371
        %v373 = vrot.slane %v372, 1
        %v374 = vadd.f32 %v372, %v373
        %vm375 = vcmask 1040384
        %v376 = vsel %vm375, %v363, %v374
        %vm377 = vcmask 123904
        %378 = vst.msk [vmem:[%s174] sm:$0x3] %vm377, %v376
        %s379 = sand.u32 %s76, 1
        %s380 = scalar_lea.sflag [#allocation3], %s379
        %s381 = sand.u32 %s76, 1
        %s382 = smul.addr %s381, 16
        %s383 = scalar_lea.vmem [#allocation2], %s382
        %s384 = sand.u32 %s102, 1
        %s385 = scalar_lea.sflag [#allocation5], %s384
        %s386 = sand.u32 %s102, 1
        %s387 = smul.addr %s386, 2
        %s388 = scalar_lea.vmem [#allocation4], %s387
        // Predicated region
        $region29: #{tpu_custom_call.1} parent=27 // pred_check
          %p389 = pneg %p86
        $region30: #{tpu_custom_call.1} parent=27 // pred_check_branch
          %391 = sbr.rel (%p389) target = $region32
        $region31: #{tpu_custom_call.1} parent=27 // pred_region
          %s393 = ssub.s32 256, 256
          %394 = vsyncadd %s380, %s393
          %s395 = smul.addr %s21, 2
          %s396 = smul.addr %s395, 128
          %s397 = scalar_lea.hbm %s2, %s396
          %s398 = sshll.u32 %s383, 4
          %s399 = int_to_ptr.vmem [resolvable:$true] %s398
          %404 = dma.vmem_to_hbm [thread:$0]  %s399, 256, %s397, %s380, 128, 128, 8
        $region32: #{tpu_custom_call.1} parent=27 // pred_fallthru
          _
        // Predicated region
        $region33: #{tpu_custom_call.1} parent=27 // pred_check
          %p405 = pneg %p112
        $region34: #{tpu_custom_call.1} parent=27 // pred_check_branch
          %407 = sbr.rel (%p405) target = $region36
        $region35: #{tpu_custom_call.1} parent=27 // pred_region
          %s409 = ssub.s32 32, 32
          %410 = vsyncadd %s385, %s409
          %s411 = smul.addr %s21, 32
          %s412 = scalar_lea.hbm %s3, %s411
          %s414 = sshll.u32 %s388, 4
          %s415 = int_to_ptr.vmem [resolvable:$true] %s414
          %417 = dma.vmem_to_hbm [thread:$0]  %s415, 32, %s412, %s385
        $region36: #{tpu_custom_call.1} parent=27 // pred_fallthru
          _
      $region28: #{tpu_custom_call.1} parent=5 // pred_fallthru
        _
      %p418 = scmp.le.s32.totalorder 2, %s16
      // Predicated region
      $region37: #{tpu_custom_call.1} parent=5 // pred_check
        %p419 = pneg %p418
      $region38: #{tpu_custom_call.1} parent=5 // pred_check_branch
        %421 = sbr.rel (%p419) target = $region40
      $region39: #{tpu_custom_call.1} parent=5 // pred_region
        %s422 = ssub.s32 %s16, 2
        // Predicated region
        $region41: #{tpu_custom_call.1} parent=39 // pred_check
          %p423 = pneg %p92
        $region42: #{tpu_custom_call.1} parent=39 // pred_check_branch
          %425 = sbr.rel (%p423) target = $region44
        $region43: #{tpu_custom_call.1} parent=39 // pred_region
          %s426 = sand.u32 %s77, 1
          %s427 = scalar_lea.sflag [#allocation3], %s426
          %s428 = sand.u32 %s77, 1
          %s429 = smul.addr %s428, 16
          %s430 = scalar_lea.vmem [#allocation2], %s429
          %431 = dma.done %s427, 256
        $region44: #{tpu_custom_call.1} parent=39 // pred_fallthru
          _
        // Predicated region
        $region45: #{tpu_custom_call.1} parent=39 // pred_check
          %p432 = pneg %p118
        $region46: #{tpu_custom_call.1} parent=39 // pred_check_branch
          %434 = sbr.rel (%p432) target = $region48
        $region47: #{tpu_custom_call.1} parent=39 // pred_region
          %s435 = sand.u32 %s103, 1
          %s436 = scalar_lea.sflag [#allocation5], %s435
          %s437 = sand.u32 %s103, 1
          %s438 = smul.addr %s437, 2
          %s439 = scalar_lea.vmem [#allocation4], %s438
          %440 = dma.done %s436, 32
        $region48: #{tpu_custom_call.1} parent=39 // pred_fallthru
          _
      $region40: #{tpu_custom_call.1} parent=5 // pred_fallthru
        _
    $region6: #{tpu_custom_call.1} parent=1 // loop_footer
      %s20 = sadd.s32 1, %s16
    $region7: #{tpu_custom_call.1} parent=1 // loop_footer_branch
      %15 = sbr.rel target = $region3
    $region8: #{tpu_custom_call.1} parent=1 // loop_exit
      _
    %441 = vsyncpa [#allocation3], 1
    %s442 = scalar_lea.sflag [#allocation3], 1
    %443 = vsyncpa %s442, 1
    %444 = vsyncpa [#allocation5], 1
    %s445 = scalar_lea.sflag [#allocation5], 1
    %446 = vsyncpa %s445, 1

</llo_original>
